<compile_context>
chip_gen: v6e
topology: v6e:2x2x1
jax: 0.10.0
libtpu: 0.0.40
codegen_flags: <defaults>
</compile_context>

<pallas_src>
import jax
import jax.numpy as jnp
import numpy as np
from jax.experimental import pallas as pl
from jax.experimental.pallas import tpu as pltpu


_VMEM = pl.BlockSpec(memory_space=pltpu.MemorySpace.VMEM)
_SMEM = pl.BlockSpec(memory_space=pltpu.MemorySpace.SMEM)


# --------------------------------------------------------------------------- #
# One-time kernel: step-invariant attention keys  w1e = enc_out @ W1^T
# --------------------------------------------------------------------------- #
def _w1e_kernel(enc_ref, w1_ref, out_ref):
    enc = enc_ref[...]
    B, L, D = enc.shape
    out_ref[...] = jnp.dot(
        enc.reshape(B * L, D), w1_ref[...],
        preferred_element_type=jnp.float32).reshape(B, L, D)


def precompute_attention_keys(enc_out, w1_t):
    B, L, D = enc_out.shape
    return pl.pallas_call(
        _w1e_kernel,
        out_shape=jax.ShapeDtypeStruct((B, L, D), jnp.float32),
        in_specs=[_VMEM, _VMEM],
        out_specs=_VMEM,
    )(enc_out, w1_t)


# --------------------------------------------------------------------------- #
# Per-step decoder kernel
# --------------------------------------------------------------------------- #
def _decoder_step_kernel(idx_ref, h_ref, c_ref, ot_ref, enc_ref, w1e_ref,
                         emb_ref, wih_y_ref, wih_o_ref, whh_ref, b_ref,
                         w2_ref, w3h_ref, w3c_ref, wout_ref, beta_ref,
                         out_ref):
    f32 = jnp.float32
    B, H = h_ref.shape
    V, E = emb_ref.shape

    # ---- embedding lookup: ids read as SMEM scalars, one-hot matmul on MXU ----
    row = jax.lax.broadcasted_iota(jnp.int32, (B, V), 0)
    col = jax.lax.broadcasted_iota(jnp.int32, (B, V), 1)
    tgt = jnp.zeros((B, V), jnp.int32)
    for b in range(B):                       # B is tiny & static (unrolled)
        tgt = jnp.where(row == b, idx_ref[b], tgt)
    one_hot = (col == tgt).astype(f32)
    prev_y = jnp.dot(one_hot, emb_ref[...], preferred_element_type=f32)    # [B,E]

    # ---- LSTMCell, concat-free: gates = y@Wih_y + o@Wih_o + h@Whh + b ----
    gates = (jnp.dot(prev_y, wih_y_ref[...], preferred_element_type=f32)
             + jnp.dot(ot_ref[...], wih_o_ref[...], preferred_element_type=f32)
             + jnp.dot(h_ref[...], whh_ref[...], preferred_element_type=f32)
             + b_ref[...])                                                 # [B,4H]
    # Whole-vreg activations; select tanh lanes for the 'g' gate (PyTorch i,f,g,o).
    lane = jax.lax.broadcasted_iota(jnp.int32, gates.shape, 1)
    g_lanes = (lane >= 2 * H) & (lane < 3 * H)
    acts = jnp.where(g_lanes, jnp.tanh(gates), jax.nn.sigmoid(gates))
    i_g = acts[:, 0 * H:1 * H]
    f_g = acts[:, 1 * H:2 * H]
    g_g = acts[:, 2 * H:3 * H]
    o_g = acts[:, 3 * H:4 * H]
    c_t = f_g * c_ref[...] + i_g * g_g                                     # [B,H]
    h_t = o_g * jnp.tanh(c_t)                                              # [B,H]

    # ---- additive attention (W_1(enc_out) precomputed outside the step) ----
    enc = enc_ref[...]                                                     # [B,L,D]
    w2h = jnp.dot(h_t, w2_ref[...], preferred_element_type=f32)            # [B,D]
    alpha = jnp.tanh(w1e_ref[...] + w2h[:, None, :])                       # [B,L,D]
    score = jnp.sum(beta_ref[...] * alpha, axis=-1)                        # [B,L]
    score = score - jnp.max(score, axis=-1, keepdims=True)
    e = jnp.exp(score)
    attn = e * pl.reciprocal(jnp.sum(e, axis=-1, keepdims=True), approx=True)
    # context via batched MXU matmul ('bql,bld->bqd' with q=1)
    ctx3 = jnp.einsum("bql,bld->bqd", attn[:, None, :], enc,
                      preferred_element_type=f32)                          # [B,1,D]
    context = jnp.sum(ctx3, axis=1)                                        # [B,D]

    # ---- output head, concat-free, softmax with EUP reciprocal ----
    o_new = jnp.tanh(
        jnp.dot(h_t, w3h_ref[...], preferred_element_type=f32)
        + jnp.dot(context, w3c_ref[...], preferred_element_type=f32))      # [B,H]
    logits = jnp.dot(o_new, wout_ref[...], preferred_element_type=f32)     # [B,V]
    logits = logits - jnp.max(logits, axis=1, keepdims=True)
    el = jnp.exp(logits)
    prob = el * pl.reciprocal(jnp.sum(el, axis=1, keepdims=True), approx=True)

    # ---- single lane-dense packed writeback [B, 3H + V] ----
    out_ref[...] = jnp.concatenate([h_t, c_t, o_new, prob], axis=1)


# --------------------------------------------------------------------------- #
# Host-side helpers / wrapper
# --------------------------------------------------------------------------- #
def prepare_params(params):
    """Split concat-style weights and fold the two LSTM biases (done once)."""
    E = params["emb"].shape[1]
    H = params["w_hh_t"].shape[0]
    return dict(
        emb=params["emb"],
        w_ih_y=params["w_ih_t"][:E],          # [E, 4H]
        w_ih_o=params["w_ih_t"][E:],          # [H, 4H]
        w_hh=params["w_hh_t"],                # [H, 4H]
        b=params["b_ih"] + params["b_hh"],    # fused bias [1, 4H]
        w1_t=params["w1_t"],                  # [D, D]
        w2=params["w2_t"],                    # [H, D]
        w3_h=params["w3_t"][:H],              # [H, H]
        w3_c=params["w3_t"][H:],              # [D, H]
        w_out=params["wout_t"],               # [H, V]
        beta=params["beta"],                  # [1, 1, D]
    )


def latex_decoder_header(prepared, dec_states, o_t, enc_out, lasttarget,
                         w1e=None):
    """Pallas-backed equivalent of LatexDecoderHeader.forward.

    Pass a cached `w1e = precompute_attention_keys(enc_out, prepared['w1_t'])`
    when decoding autoregressively so the step-invariant W_1(enc_out) matmul
    is not redone every step.
    """
    h0, c0 = dec_states
    B, H = h0.shape
    V = prepared["emb"].shape[0]
    idx = lasttarget.reshape(B).astype(jnp.int32)
    if w1e is None:
        w1e = precompute_attention_keys(enc_out, prepared["w1_t"])

    packed = pl.pallas_call(
        _decoder_step_kernel,
        out_shape=jax.ShapeDtypeStruct((B, 3 * H + V), jnp.float32),
        in_specs=[_SMEM] + [_VMEM] * 15,
        out_specs=_VMEM,
    )(idx, h0, c0, o_t, enc_out, w1e,
      prepared["emb"], prepared["w_ih_y"], prepared["w_ih_o"],
      prepared["w_hh"], prepared["b"],
      prepared["w2"], prepared["w3_h"], prepared["w3_c"],
      prepared["w_out"], prepared["beta"])

    h_t = packed[:, 0 * H:1 * H]
    c_t = packed[:, 1 * H:2 * H]
    o_new = packed[:, 2 * H:3 * H]
    logit = packed[:, 3 * H:3 * H + V]
    return (h_t, c_t), o_new, logit


def reference_forward(params, dec_states, o_t, enc_out, lasttarget):
    """Plain-JAX reference mirroring the PyTorch semantics."""
    h0, c0 = dec_states
    B, H = h0.shape
    idx = lasttarget.reshape(B).astype(jnp.int32)
    prev_y = params["emb"][idx]
    inp = jnp.concatenate([prev_y, o_t], axis=1)
    gates = (inp @ params["w_ih_t"] + params["b_ih"]
             + h0 @ params["w_hh_t"] + params["b_hh"])
    i_g = jax.nn.sigmoid(gates[:, 0 * H:1 * H])
    f_g = jax.nn.sigmoid(gates[:, 1 * H:2 * H])
    g_g = jnp.tanh(gates[:, 2 * H:3 * H])
    o_g = jax.nn.sigmoid(gates[:, 3 * H:4 * H])
    c_t = f_g * c0 + i_g * g_g
    h_t = o_g * jnp.tanh(c_t)
    alpha = jnp.tanh(jnp.einsum("bld,de->ble", enc_out, params["w1_t"])
                     + (h_t @ params["w2_t"])[:, None, :])
    score = jnp.sum(params["beta"] * alpha, axis=-1)
    attn = jax.nn.softmax(score, axis=-1)
    context = jnp.einsum("bl,bld->bd", attn, enc_out)
    o_new = jnp.tanh(jnp.concatenate([h_t, context], axis=1) @ params["w3_t"])
    logit = jax.nn.softmax(o_new @ params["wout_t"], axis=1)
    return (h_t, c_t), o_new, logit


if __name__ == "__main__":
    # Small shapes consistent with the module (out_size, emb, dec_rnn_h, enc_out_dim).
    B, L = 2, 16
    V, E, H, D = 32, 32, 32, 32   # out_size, emb_size, dec_rnn_h, enc_out_dim
    STEPS = 3                     # autoregressive steps, w1e computed once

    key = jax.random.PRNGKey(0)
    ks = jax.random.split(key, 17)

    def u(k, shape, scale=0.05):
        return jax.random.uniform(k, shape, jnp.float32, -scale, scale)

    # Parameters (torch Linear/LSTM weights stored transposed as [in, out]).
    params = dict(
        emb=u(ks[0], (V, E), 0.1),            # nn.Embedding(out_size, emb_size)
        w_ih_t=u(ks[1], (E + H, 4 * H)),      # LSTMCell weight_ih.T
        b_ih=u(ks[2], (1, 4 * H)),            # LSTMCell bias_ih
        w_hh_t=u(ks[3], (H, 4 * H)),          # LSTMCell weight_hh.T
        b_hh=u(ks[4], (1, 4 * H)),            # LSTMCell bias_hh
        w1_t=u(ks[5], (D, D)),                # W_1.weight.T
        w2_t=u(ks[6], (H, D)),                # W_2.weight.T
        w3_t=u(ks[7], (H + D, H)),            # W_3.weight.T
        wout_t=u(ks[8], (H, V)),              # W_out.weight.T
        beta=u(ks[9], (1, 1, D), 0.01),       # beta, init.uniform_(-0.01, 0.01)
    )

    # Inputs.
    h0 = 0.5 * jax.random.normal(ks[10], (B, H), jnp.float32)
    c0 = 0.5 * jax.random.normal(ks[11], (B, H), jnp.float32)
    o0 = 0.5 * jax.random.normal(ks[12], (B, H), jnp.float32)
    enc_out = 0.5 * jax.random.normal(ks[13], (B, L, D), jnp.float32)
    # Teacher-forced token stream so kernel & reference see identical inputs.
    tokens = jax.random.randint(ks[14], (STEPS, B, 1), 0, V, jnp.int32)

    prepared = prepare_params(params)
    # Step-invariant attention keys: computed once, reused across decode steps.
    w1e = precompute_attention_keys(enc_out, prepared["w1_t"])

    kh, kc, ko = h0, c0, o0          # kernel-path state
    rh, rc, ro = h0, c0, o0          # reference-path state
    for step in range(STEPS):
        lasttarget = tokens[step]
        (kh, kc), ko, k_logit = latex_decoder_header(
            prepared, (kh, kc), ko, enc_out, lasttarget, w1e=w1e)
        jax.block_until_ready((kh, kc, ko, k_logit))

        (rh, rc), ro, r_logit = reference_forward(
            params, (rh, rc), ro, enc_out, lasttarget)

        np.testing.assert_allclose(np.asarray(kh), np.asarray(rh), rtol=1e-2, atol=3e-3)
        np.testing.assert_allclose(np.asarray(kc), np.asarray(rc), rtol=1e-2, atol=3e-3)
        np.testing.assert_allclose(np.asarray(ko), np.asarray(ro), rtol=1e-2, atol=3e-3)
        np.testing.assert_allclose(np.asarray(k_logit), np.asarray(r_logit),
                                   rtol=1e-2, atol=3e-3)

    assert k_logit.shape == (B, V) and kh.shape == (B, H)
    print("KERNEL_OK")
</pallas_src>

<mosaic_0001>
module attributes {stable_mosaic.version = 11 : i64} {
  func.func @_w1e_kernel(%arg0: memref<2x16x32xf32, #tpu.memory_space<vmem>>, %arg1: memref<32x32xf32, #tpu.memory_space<vmem>>, %arg2: memref<2x16x32xf32, #tpu.memory_space<vmem>>) attributes {dimension_semantics = [], scalar_prefetch = 0 : i64, scratch_operands = 0 : i64, tpu.core_type = #tpu.core_type<tc>} {
    %c0 = arith.constant 0 : index
    %c0_0 = arith.constant 0 : index
    %c0_1 = arith.constant 0 : index
    %0 = vector.load %arg0[%c0, %c0_0, %c0_1] : memref<2x16x32xf32, #tpu.memory_space<vmem>>, vector<2x16x32xf32>
    %1 = vector.shape_cast %0 : vector<2x16x32xf32> to vector<32x32xf32>
    %c0_2 = arith.constant 0 : index
    %c0_3 = arith.constant 0 : index
    %2 = vector.load %arg1[%c0_2, %c0_3] : memref<32x32xf32, #tpu.memory_space<vmem>>, vector<32x32xf32>
    %cst = arith.constant dense<0.000000e+00> : vector<32x32xf32>
    %3 = tpu.matmul %1, %2, %cst {dimension_numbers = #tpu.dot_dimension_numbers<[1], [0], [0], [1], [0, 0, 1, 1], [], []>} : vector<32x32xf32>, vector<32x32xf32>, vector<32x32xf32> -> vector<32x32xf32>
    %4 = vector.shape_cast %3 : vector<32x32xf32> to vector<2x16x32xf32>
    %c0_4 = arith.constant 0 : index
    %c0_5 = arith.constant 0 : index
    %c0_6 = arith.constant 0 : index
    %5 = vector.load %arg2[%c0_4, %c0_5, %c0_6] : memref<2x16x32xf32, #tpu.memory_space<vmem>>, vector<2x16x32xf32>
    tpu.vector_store %arg2[%c0_4, %c0_5, %c0_6], %4 {strides = array<i32>} : memref<2x16x32xf32, #tpu.memory_space<vmem>>, vector<2x16x32xf32>,
    return
  }
}

</mosaic_0001>

<llo_original>
// kernel: tpu_custom_call.1
$region0: #{tpu_custom_call.1}
  #allocation0 [shape = 'u32[]', space=smem, size = 0x4, offset = 0x4, fixed_abs, tag = 'smem constant byte address 0x4 - core index']
  #allocation1 [shape = 'u32[144,128]{1,0:T(1,128)}', space=vmem, size = 0x12000, scoped, tag = 'internal scratch']
  %s0 = inlined_call_operand.hbm [shape: f32[2,16,32], index: 0, kind: input, shape index: {}]
  %s1 = inlined_call_operand.hbm [shape: f32[32,32], index: 1, kind: input, shape index: {}]
  %s2 = inlined_call_operand.hbm [shape: f32[2,16,32], index: 2, kind: output, shape index: {}]
  %s3 = sld [smem:[#allocation0]]
  $region26: #{tpu_custom_call.1} parent=0
    _
  %s5 = ssub.s32 1, %s3
  %s6 = scalar_select 0, %s5, %s3
  $region1: #{tpu_custom_call.1} parent=0
    #allocation2 [shape = 'u8[16384]{0}', space=vmem, size = 0x4000, scoped, tag = 'input window, operand 0, single buffered']
    #allocation3 [shape = 's32[1]{0}', space=sflag, size = 0x4, scoped, tag = 'scoped memory for tpu_custom_call.1']
    #allocation4 [shape = 's32[1]{0}', space=sflag, size = 0x4, scoped, tag = 'scoped memory for tpu_custom_call.1']
    #allocation5 [shape = 'u8[16384]{0}', space=vmem, size = 0x4000, scoped, tag = 'input window, operand 1, single buffered']
    #allocation6 [shape = 's32[1]{0}', space=sflag, size = 0x4, scoped, tag = 'scoped memory for tpu_custom_call.1']
    #allocation7 [shape = 'u8[16384]{0}', space=vmem, size = 0x4000, scoped, tag = 'output window, operand 0, single buffered']
    %7 = vsyncpa [#allocation3], 0
    %8 = vsyncpa [#allocation6], 0
    %9 = vsyncpa [#allocation4], 0
    // Predicated region
    $region2: #{tpu_custom_call.1} parent=1 // pred_check
      _
    $region3: #{tpu_custom_call.1} parent=1 // pred_check_branch
      %11 = sbr.rel (0) target = $region5
    $region4: #{tpu_custom_call.1} parent=1 // pred_region
      %s13 = ssub.s32 512, 512
      %14 = vsyncadd [#allocation3], %s13
      %s15 = sshll.u32 [#allocation2], 4
      %s16 = int_to_ptr.vmem [resolvable:$true] %s15
      %21 = dma.hbm_to_vmem [thread:$0]  %s0, 512, %s16, [#allocation3], 128, 128, 8
    $region5: #{tpu_custom_call.1} parent=1 // pred_fallthru
      _
    // Predicated region
    $region6: #{tpu_custom_call.1} parent=1 // pred_check
      _
    $region7: #{tpu_custom_call.1} parent=1 // pred_check_branch
      %23 = sbr.rel (0) target = $region9
    $region8: #{tpu_custom_call.1} parent=1 // pred_region
      %s25 = ssub.s32 512, 512
      %26 = vsyncadd [#allocation6], %s25
      %s27 = sshll.u32 [#allocation5], 4
      %s28 = int_to_ptr.vmem [resolvable:$true] %s27
      %33 = dma.hbm_to_vmem [thread:$0]  %s1, 512, %s28, [#allocation6], 128, 128, 8
    $region9: #{tpu_custom_call.1} parent=1 // pred_fallthru
      _
    // Predicated region
    $region10: #{tpu_custom_call.1} parent=1 // pred_check
      _
    $region11: #{tpu_custom_call.1} parent=1 // pred_check_branch
      %35 = sbr.rel (0) target = $region13
    $region12: #{tpu_custom_call.1} parent=1 // pred_region
      %36 = dma.done [#allocation3], 512
    $region13: #{tpu_custom_call.1} parent=1 // pred_fallthru
      _
    // Predicated region
    $region14: #{tpu_custom_call.1} parent=1 // pred_check
      _
    $region15: #{tpu_custom_call.1} parent=1 // pred_check_branch
      %38 = sbr.rel (0) target = $region17
    $region16: #{tpu_custom_call.1} parent=1 // pred_region
      %39 = dma.done [#allocation6], 512
    $region17: #{tpu_custom_call.1} parent=1 // pred_fallthru
      _
    %v40 = vld [vmem:[#allocation2] sm:$0xff]
    %v41 = vld [vmem:[#allocation2 + $0x8] sm:$0xff]
    %v42 = vld [vmem:[#allocation2 + $0x10] sm:$0xff]
    %v43 = vld [vmem:[#allocation2 + $0x18] sm:$0xff]
    %v44 = vld [vmem:[#allocation5] sm:$0xff]
    %v45 = vld [vmem:[#allocation5 + $0x8] sm:$0xff]
    %v46 = vld [vmem:[#allocation5 + $0x10] sm:$0xff]
    %v47 = vld [vmem:[#allocation5 + $0x18] sm:$0xff]
    %vm48 = vcmask 261120
    %v50 = vsel %vm48, %v40, 0
    %v53 = vsel %vm48, %v41, 0
    %v56 = vsel %vm48, %v42, 0
    %v59 = vsel %vm48, %v43, 0
    %61 = vmatprep.subr.mxu0 0.0
    %62 = vmatpush1.msra.mxu0 0.0
    %63 = vmatprep.subr.mxu0 0.0
    %64 = vmatpush1.msra.mxu0 0.0
    %65 = vmatprep.subr.mxu0 0.0
    %66 = vmatpush1.msra.mxu0 0.0
    %67 = vmatprep.subr.mxu0 0.0
    %68 = vmatpush1.msra.mxu0 0.0
    %69 = vmatprep.subr.mxu0 0.0
    %70 = vmatpush1.msra.mxu0 0.0
    %71 = vmatprep.subr.mxu0 0.0
    %72 = vmatpush1.msra.mxu0 0.0
    %73 = vmatprep.subr.mxu0 0.0
    %74 = vmatpush1.msra.mxu0 0.0
    %75 = vmatprep.subr.mxu0 0.0
    %76 = vmatpush1.msra.mxu0 0.0
    %77 = vmatprep.subr.mxu0 0.0
    %78 = vmatpush1.msra.mxu0 0.0
    %79 = vmatprep.subr.mxu0 0.0
    %80 = vmatpush1.msra.mxu0 0.0
    %81 = vmatprep.subr.mxu0 0.0
    %82 = vmatpush1.msra.mxu0 0.0
    %83 = vmatprep.subr.mxu0 0.0
    %84 = vmatpush1.msra.mxu0 0.0
    %85 = vmatprep.subr.mxu0 0.0
    %86 = vmatpush1.msra.mxu0 %v47
    %87 = vmatprep.subr.mxu0 0.0
    %88 = vmatpush1.msra.mxu0 %v46
    %89 = vmatprep.subr.mxu0 0.0
    %90 = vmatpush1.msra.mxu0 %v45
    %91 = vmatprep.subr.mxu0 0.0
    %92 = vmatpush1.msra.mxu0 %v44
    %93 = vmatprep.subr.mxu0 0.0
    %94 = vmatpush2.msra.mxu0 0.0
    %95 = vmatprep.subr.mxu0 0.0
    %96 = vmatpush2.msra.mxu0 0.0
    %97 = vmatprep.subr.mxu0 0.0
    %98 = vmatpush2.msra.mxu0 0.0
    %99 = vmatprep.subr.mxu0 0.0
    %100 = vmatpush2.msra.mxu0 0.0
    %101 = vmatprep.subr.mxu0 0.0
    %102 = vmatpush2.msra.mxu0 0.0
    %103 = vmatprep.subr.mxu0 0.0
    %104 = vmatpush2.msra.mxu0 0.0
    %105 = vmatprep.subr.mxu0 0.0
    %106 = vmatpush2.msra.mxu0 0.0
    %107 = vmatprep.subr.mxu0 0.0
    %108 = vmatpush2.msra.mxu0 0.0
    %109 = vmatprep.subr.mxu0 0.0
    %110 = vmatpush2.msra.mxu0 0.0
    %111 = vmatprep.subr.mxu0 0.0
    %112 = vmatpush2.msra.mxu0 0.0
    %113 = vmatprep.subr.mxu0 0.0
    %114 = vmatpush2.msra.mxu0 0.0
    %115 = vmatprep.subr.mxu0 0.0
    %116 = vmatpush2.msra.mxu0 0.0
    %117 = vmatprep.subr.mxu0 0.0
    %118 = vmatpush2.msra.mxu0 0.0
    %119 = vmatprep.subr.mxu0 0.0
    %120 = vmatpush2.msra.mxu0 0.0
    %121 = vmatprep.subr.mxu0 0.0
    %122 = vmatpush2.msra.mxu0 0.0
    %123 = vmatprep.subr.mxu0 0.0
    %124 = vmatpush2.msra.mxu0 0.0
    %125 = vmatprep.mubr.f32.mxu0 0.0
    %126 = vmatmul.mubr.f32.gmra.mxu0 %v50
    %v127 = vpop.f32.mrf.mxu0
    %v128 = vadd.f32 0.0, %v127
    %v129 = vpop.f32.mrf.mxu0
    %130 = vmatprep.mubr.f32.mxu0 0.0
    %131 = vmatmul.mubr.f32.gmra.mxu0 %v53
    %v132 = vpop.f32.mrf.mxu0
    %v133 = vadd.f32 0.0, %v132
    %v134 = vpop.f32.mrf.mxu0
    %135 = vmatprep.mubr.f32.mxu0 0.0
    %136 = vmatmul.mubr.f32.gmra.mxu0 %v56
    %v137 = vpop.f32.mrf.mxu0
    %v138 = vadd.f32 0.0, %v137
    %v139 = vpop.f32.mrf.mxu0
    %140 = vmatprep.mubr.f32.mxu0 0.0
    %141 = vmatmul.mubr.f32.gmra.mxu0 %v59
    %v142 = vpop.f32.mrf.mxu0
    %v143 = vadd.f32 0.0, %v142
    %v144 = vpop.f32.mrf.mxu0
    %145 = vdwg.mxu0
    %146 = vst.msk [vmem:[#allocation7] sm:$0xff] %vm48, %v128
    %147 = vst.msk [vmem:[#allocation7 + $0x8] sm:$0xff] %vm48, %v133
    %148 = vst.msk [vmem:[#allocation7 + $0x10] sm:$0xff] %vm48, %v138
    %149 = vst.msk [vmem:[#allocation7 + $0x18] sm:$0xff] %vm48, %v143
    // Predicated region
    $region18: #{tpu_custom_call.1} parent=1 // pred_check
      _
    $region19: #{tpu_custom_call.1} parent=1 // pred_check_branch
      %151 = sbr.rel (0) target = $region21
    $region20: #{tpu_custom_call.1} parent=1 // pred_region
      %s153 = ssub.s32 512, 512
      %154 = vsyncadd [#allocation4], %s153
      %s155 = sshll.u32 [#allocation7], 4
      %s156 = int_to_ptr.vmem [resolvable:$true] %s155
      %161 = dma.vmem_to_hbm [thread:$0]  %s156, 512, %s2, [#allocation4], 128, 128, 8
    $region21: #{tpu_custom_call.1} parent=1 // pred_fallthru
      _
    // Predicated region
    $region22: #{tpu_custom_call.1} parent=1 // pred_check
      _
    $region23: #{tpu_custom_call.1} parent=1 // pred_check_branch
      %163 = sbr.rel (0) target = $region25
    $region24: #{tpu_custom_call.1} parent=1 // pred_region
      %164 = dma.done [#allocation4], 512
    $region25: #{tpu_custom_call.1} parent=1 // pred_fallthru
      _
    %165 = vsyncpa [#allocation3], 1
    %166 = vsyncpa [#allocation6], 1
    %167 = vsyncpa [#allocation4], 1

</llo_original>
